<compile_context>
chip_gen: v7x
topology: tpu7x:2x2x1
jax: 0.10.0
libtpu: 0.0.40
codegen_flags: <defaults>
</compile_context>

<pallas_src>
import functools

import jax
import jax.numpy as jnp
from jax.experimental import pallas as pl
from jax.experimental.pallas import tpu as pltpu


# ----------------------------- tiling helper -------------------------------

def _pick_tile_rows(total_rows, factor, d, dtype,
                    vmem_budget_bytes=12 * 1024 * 1024):
    """Pick a row-tile size:
       * divides total_rows,
       * multiple of the dtype sublane packing (8 f32 / 16 bf16 / 32 int8)
         unless it equals the full row count,
       * double-buffered blocks + f32 temporaries fit the VMEM budget,
       * prefers >= 2 grid steps so both v7x TensorCores get work."""
    itemsize = jnp.dtype(dtype).itemsize
    sublane = max(8, 32 // itemsize)
    # Per row of the grid step:
    #   blocks: coarse q/out (2*D) + fine k/v or q/out (2*F*D), each double-buffered
    #   f32 temporaries: acc + ~3 live (tR, D) vregs + (tR, 1) weights
    per_row = 2 * (2 + 2 * factor) * d * itemsize + (4 * d + 8) * 4
    cap = min(total_rows, max(sublane, vmem_budget_bytes // max(per_row, 1)))

    def valid(c):
        return total_rows % c == 0 and (c % sublane == 0 or c == total_rows)

    best_any = None
    for cand in range(cap, 0, -1):
        if not valid(cand):
            continue
        if best_any is None:
            best_any = cand
        if total_rows // cand >= 2:          # megacore-friendly (v7x)
            return cand
    return best_any or total_rows


# ----------------------------- Pallas kernels -------------------------------

def _downsample_kernel(q_ref, k_ref, v_ref, o_ref, *, factor, d):
    # q_ref/o_ref: (tR, D)   k_ref/v_ref: (tR, F*D)
    q = q_ref[...]                                            # input dtype
    acc = jnp.zeros(q.shape, jnp.float32)
    for f in range(factor):                                   # static unroll
        kf = k_ref[:, f * d:(f + 1) * d]                      # lane slice, free
        vf = v_ref[:, f * d:(f + 1) * d]
        w = jnp.sum((q * kf).astype(jnp.float32), axis=-1, keepdims=True)
        acc = acc + w * vf.astype(jnp.float32)
    o_ref[...] = acc.astype(o_ref.dtype)


def _upsample_kernel(q_ref, k_ref, v_ref, o_ref, *, factor, d):
    # q_ref/o_ref: (tR, F*D)   k_ref/v_ref: (tR, D)
    k = k_ref[...]                                            # input dtype
    v = v_ref[...].astype(jnp.float32)
    for f in range(factor):                                   # static unroll
        qf = q_ref[:, f * d:(f + 1) * d]
        w = jnp.sum((qf * k).astype(jnp.float32), axis=-1, keepdims=True)
        o_ref[:, f * d:(f + 1) * d] = (w * v).astype(o_ref.dtype)  # dense vst


# ----------------------------- wrappers --------------------------------------

def attention_downsampling(query, key, value, factor, *, tile_rows=None):
    """query: (B, S//factor, D), key/value: (B, S, D) -> (B, S//factor, D)."""
    B, S, D = key.shape
    assert S % factor == 0, "seq_len must be divisible by factor"
    Sg = S // factor
    assert query.shape == (B, Sg, D)
    R = B * Sg
    # Contiguous (metadata-only) reshapes: no extra HBM traffic.
    qf = query.reshape(R, D)
    kf = key.reshape(R, factor * D)
    vf = value.reshape(R, factor * D)

    tr = tile_rows or _pick_tile_rows(R, factor, D, query.dtype)
    assert R % tr == 0
    itemsize = jnp.dtype(query.dtype).itemsize
    cost = pl.CostEstimate(
        flops=4 * B * S * D,
        transcendentals=0,
        bytes_accessed=(2 * B * Sg * D + 2 * B * S * D) * itemsize)

    kernel = functools.partial(_downsample_kernel, factor=factor, d=D)
    out = pl.pallas_call(
        kernel,
        out_shape=jax.ShapeDtypeStruct((R, D), query.dtype),
        grid=(R // tr,),
        in_specs=[
            pl.BlockSpec((tr, D), lambda r: (r, 0)),
            pl.BlockSpec((tr, factor * D), lambda r: (r, 0)),
            pl.BlockSpec((tr, factor * D), lambda r: (r, 0)),
        ],
        out_specs=pl.BlockSpec((tr, D), lambda r: (r, 0)),
        compiler_params=pltpu.CompilerParams(
            dimension_semantics=("parallel",),
            vmem_limit_bytes=32 * 1024 * 1024),
        cost_estimate=cost,
    )(qf, kf, vf)
    return out.reshape(B, Sg, D)


def attention_upsampling(query, key, value, factor, *, tile_rows=None):
    """query: (B, S, D), key/value: (B, S//factor, D) -> (B, S, D)."""
    B, S, D = query.shape
    assert S % factor == 0, "seq_len must be divisible by factor"
    Sg = S // factor
    assert key.shape == (B, Sg, D) and value.shape == (B, Sg, D)
    R = B * Sg
    qf = query.reshape(R, factor * D)   # contiguous reshape
    kf = key.reshape(R, D)
    vf = value.reshape(R, D)

    tr = tile_rows or _pick_tile_rows(R, factor, D, query.dtype)
    assert R % tr == 0
    itemsize = jnp.dtype(query.dtype).itemsize
    cost = pl.CostEstimate(
        flops=4 * B * S * D,
        transcendentals=0,
        bytes_accessed=(2 * B * S * D + 2 * B * Sg * D) * itemsize)

    kernel = functools.partial(_upsample_kernel, factor=factor, d=D)
    out = pl.pallas_call(
        kernel,
        out_shape=jax.ShapeDtypeStruct((R, factor * D), query.dtype),
        grid=(R // tr,),
        in_specs=[
            pl.BlockSpec((tr, factor * D), lambda r: (r, 0)),
            pl.BlockSpec((tr, D), lambda r: (r, 0)),
            pl.BlockSpec((tr, D), lambda r: (r, 0)),
        ],
        out_specs=pl.BlockSpec((tr, factor * D), lambda r: (r, 0)),
        compiler_params=pltpu.CompilerParams(
            dimension_semantics=("parallel",),
            vmem_limit_bytes=32 * 1024 * 1024),
        cost_estimate=cost,
    )(qf, kf, vf)
    return out.reshape(B, S, D)


class AttentionSampling:
    """JAX/Pallas port of the sampling branches of the PyTorch AttentionSampling."""

    def __init__(self, d_model, factor, sampling_type,
                 use_full_attention=False, post_norm=False, seed=0):
        assert sampling_type in ("downsampling", "upsampling")
        if use_full_attention:
            # TODO(synk): TransformerLayer(d_model, 8 heads, ...) is external to the
            # provided module; only the sampling attention branches are implemented.
            raise NotImplementedError("use_full_attention=True not supported here")
        self.factor = factor
        self.sampling_type = sampling_type
        self.d_model = d_model
        self.post_norm = post_norm

        # Deterministic init for the module's parameters.  (ffn / norm1 exist in
        # __init__ but are never used by forward() -- mirrored here.)
        k0, k1 = jax.random.split(jax.random.PRNGKey(seed))
        h = d_model * 4
        self.ffn_w1 = jax.random.normal(k0, (d_model, h), jnp.float32) * (d_model ** -0.5)
        self.ffn_b1 = jnp.zeros((h,), jnp.float32)
        self.ffn_w2 = jax.random.normal(k1, (h, d_model), jnp.float32) * (h ** -0.5)
        self.ffn_b2 = jnp.zeros((d_model,), jnp.float32)
        self.norm1_gamma = jnp.ones((d_model,), jnp.float32)
        self.norm1_beta = jnp.zeros((d_model,), jnp.float32)

    def __call__(self, query, key, value):
        if self.sampling_type == "downsampling":
            return attention_downsampling(query, key, value, self.factor)
        return attention_upsampling(query, key, value, self.factor)


# ----------------------------- reference (pure JAX) --------------------------

def _ref_downsampling(q, k, v, factor):
    B, S, D = k.shape
    k4 = k.reshape(B, S // factor, factor, D)
    w = jnp.einsum("bsd,bsfd->bsf", q, k4).reshape(B, S)
    out = jnp.einsum("bs,bsd->bsd", w, v)
    return out.reshape(B, S // factor, factor, D).sum(axis=2)


def _ref_upsampling(q, k, v, factor):
    B, S, D = q.shape
    q4 = q.reshape(B, S // factor, factor, D)
    w = jnp.einsum("bsfd,bsd->bsf", q4, k)
    out = jnp.einsum("bsf,bsd->bsfd", w, v)
    return out.reshape(B, S, D)


# ----------------------------- main -------------------------------------------

if __name__ == "__main__":
    B, D, F = 2, 128, 2

    rng = jax.random.PRNGKey(0)
    kq, kk, kv, kq2, kk2, kv2 = jax.random.split(rng, 6)

    # ---- small shapes ----
    S = 16
    Sg = S // F
    q_down = jax.random.normal(kq, (B, Sg, D), jnp.float32)
    k_full = jax.random.normal(kk, (B, S, D), jnp.float32)
    v_full = jax.random.normal(kv, (B, S, D), jnp.float32)

    mod_down = AttentionSampling(D, F, "downsampling", False, False)
    out_down = jax.block_until_ready(mod_down(q_down, k_full, v_full))
    ref_down = _ref_downsampling(q_down, k_full, v_full, F)
    assert out_down.shape == (B, Sg, D)
    assert jnp.allclose(out_down, ref_down, atol=1e-4, rtol=1e-4)

    q_up = jax.random.normal(kq2, (B, S, D), jnp.float32)
    k_coarse = k_full[:, :Sg, :]
    v_coarse = v_full[:, :Sg, :]

    mod_up = AttentionSampling(D, F, "upsampling", False, False)
    out_up = jax.block_until_ready(mod_up(q_up, k_coarse, v_coarse))
    ref_up = _ref_upsampling(q_up, k_coarse, v_coarse, F)
    assert out_up.shape == (B, S, D)
    assert jnp.allclose(out_up, ref_up, atol=1e-4, rtol=1e-4)

    # ---- exercise the multi-tile grid (forced tile_rows < B*Sg) ----
    S2 = 64
    Sg2 = S2 // F
    q2d = jax.random.normal(kq, (B, Sg2, D), jnp.float32)
    k2 = jax.random.normal(kk2, (B, S2, D), jnp.float32)
    v2 = jax.random.normal(kv2, (B, S2, D), jnp.float32)
    out2 = jax.block_until_ready(
        attention_downsampling(q2d, k2, v2, F, tile_rows=8))
    assert jnp.allclose(out2, _ref_downsampling(q2d, k2, v2, F),
                        atol=1e-4, rtol=1e-4)

    q2u = jax.random.normal(kq2, (B, S2, D), jnp.float32)
    out3 = jax.block_until_ready(
        attention_upsampling(q2u, k2[:, :Sg2, :], v2[:, :Sg2, :], F,
                             tile_rows=8))
    assert jnp.allclose(out3, _ref_upsampling(q2u, k2[:, :Sg2, :],
                                              v2[:, :Sg2, :], F),
                        atol=1e-4, rtol=1e-4)

    # ---- bf16 path (lane-slice formulation is packing-safe) ----
    out_bf = jax.block_until_ready(
        attention_downsampling(q_down.astype(jnp.bfloat16),
                               k_full.astype(jnp.bfloat16),
                               v_full.astype(jnp.bfloat16), F))
    assert jnp.allclose(out_bf.astype(jnp.float32), ref_down, atol=2e-1, rtol=2e-1)

    print("KERNEL_OK")
</pallas_src>

<mosaic_0001>
module attributes {stable_mosaic.version = 11 : i64} {
  func.func @_downsample_kernel(%arg0: i32, %arg1: memref<8x128xf32, #tpu.memory_space<vmem>>, %arg2: memref<8x256xf32, #tpu.memory_space<vmem>>, %arg3: memref<8x256xf32, #tpu.memory_space<vmem>>, %arg4: memref<8x128xf32, #tpu.memory_space<vmem>>) attributes {dimension_semantics = [#tpu.dimension_semantics<parallel>], iteration_bounds = array<i64: 2>, scalar_prefetch = 0 : i64, scratch_operands = 0 : i64, tpu.core_type = #tpu.core_type<tc>, window_params = [{transform_indices = @transform_0, window_bounds = array<i64: 8, 128>}, {transform_indices = @transform_1, window_bounds = array<i64: 8, 256>}, {transform_indices = @transform_2, window_bounds = array<i64: 8, 256>}, {transform_indices = @transform_3, window_bounds = array<i64: 8, 128>}]} {
    %c0 = arith.constant 0 : index
    %c0_0 = arith.constant 0 : index
    %0 = vector.load %arg1[%c0, %c0_0] : memref<8x128xf32, #tpu.memory_space<vmem>>, vector<8x128xf32>
    %cst = arith.constant 0.000000e+00 : f32
    %1 = vector.broadcast %cst : f32 to vector<8x128xf32>
    %c0_1 = arith.constant 0 : index
    %c0_2 = arith.constant 0 : index
    %2 = vector.load %arg2[%c0_1, %c0_2] : memref<8x256xf32, #tpu.memory_space<vmem>>, vector<8x128xf32>
    %c0_3 = arith.constant 0 : index
    %c0_4 = arith.constant 0 : index
    %3 = vector.load %arg3[%c0_3, %c0_4] : memref<8x256xf32, #tpu.memory_space<vmem>>, vector<8x128xf32>
    %4 = arith.mulf %0, %2 : vector<8x128xf32>
    %cst_5 = arith.constant dense<0.000000e+00> : vector<8xf32>
    %5 = vector.multi_reduction <add>, %4, %cst_5 [1] : vector<8x128xf32> to vector<8xf32>
    %6 = vector.shape_cast %5 : vector<8xf32> to vector<8x1xf32>
    %7 = vector.broadcast %6 : vector<8x1xf32> to vector<8x128xf32>
    %8 = arith.mulf %7, %3 : vector<8x128xf32>
    %9 = arith.addf %1, %8 : vector<8x128xf32>
    %c0_6 = arith.constant 0 : index
    %c128 = arith.constant 128 : index
    %10 = vector.load %arg2[%c0_6, %c128] : memref<8x256xf32, #tpu.memory_space<vmem>>, vector<8x128xf32>
    %c0_7 = arith.constant 0 : index
    %c128_8 = arith.constant 128 : index
    %11 = vector.load %arg3[%c0_7, %c128_8] : memref<8x256xf32, #tpu.memory_space<vmem>>, vector<8x128xf32>
    %12 = arith.mulf %0, %10 : vector<8x128xf32>
    %cst_9 = arith.constant dense<0.000000e+00> : vector<8xf32>
    %13 = vector.multi_reduction <add>, %12, %cst_9 [1] : vector<8x128xf32> to vector<8xf32>
    %14 = vector.shape_cast %13 : vector<8xf32> to vector<8x1xf32>
    %15 = vector.broadcast %14 : vector<8x1xf32> to vector<8x128xf32>
    %16 = arith.mulf %15, %11 : vector<8x128xf32>
    %17 = arith.addf %9, %16 : vector<8x128xf32>
    %c0_10 = arith.constant 0 : index
    %c0_11 = arith.constant 0 : index
    %18 = vector.load %arg4[%c0_10, %c0_11] : memref<8x128xf32, #tpu.memory_space<vmem>>, vector<8x128xf32>
    tpu.vector_store %arg4[%c0_10, %c0_11], %17 {strides = array<i32>} : memref<8x128xf32, #tpu.memory_space<vmem>>, vector<8x128xf32>,
    return
  }
  func.func @transform_0(%arg0: i32) -> (i32, i32) {
    %c0_i32 = arith.constant 0 : i32
    %c0_i32_0 = arith.constant 0 : i32
    return %arg0, %c0_i32 : i32, i32
  }
  func.func @transform_1(%arg0: i32) -> (i32, i32) {
    %c0_i32 = arith.constant 0 : i32
    %c0_i32_0 = arith.constant 0 : i32
    return %arg0, %c0_i32 : i32, i32
  }
  func.func @transform_2(%arg0: i32) -> (i32, i32) {
    %c0_i32 = arith.constant 0 : i32
    %c0_i32_0 = arith.constant 0 : i32
    return %arg0, %c0_i32 : i32, i32
  }
  func.func @transform_3(%arg0: i32) -> (i32, i32) {
    %c0_i32 = arith.constant 0 : i32
    %c0_i32_0 = arith.constant 0 : i32
    return %arg0, %c0_i32 : i32, i32
  }
}

</mosaic_0001>

<llo_original>
// kernel: tpu_custom_call.1
$region0: #{tpu_custom_call.1}
  #allocation0 [shape = 'u32[]', space=smem, size = 0x4, offset = 0x4, fixed_abs, tag = 'smem constant byte address 0x4 - core index']
  #allocation1 [shape = 'u32[144,128]{1,0:T(1,128)}', space=vmem, size = 0x12000, scoped, tag = 'internal scratch']
  %s0 = inlined_call_operand.hbm [shape: f32[16,128], index: 0, kind: input, shape index: {}]
  %s1 = inlined_call_operand.hbm [shape: f32[16,256], index: 1, kind: input, shape index: {}]
  %s2 = inlined_call_operand.hbm [shape: f32[16,256], index: 2, kind: input, shape index: {}]
  %s3 = inlined_call_operand.hbm [shape: f32[16,128], index: 3, kind: output, shape index: {}]
  %s4 = sld [smem:[#allocation0]]
  $region57: #{tpu_custom_call.1} parent=0
    _
  %s6 = ssub.s32 1, %s4
  %s7 = scalar_select 0, %s6, %s4
  $region1: #{tpu_custom_call.1} parent=0
    #allocation2 [shape = 'u8[8192]{0}', space=vmem, size = 0x2000, scoped, tag = 'input window, operand 0']
    #allocation3 [shape = 's32[2]{0}', space=sflag, size = 0x8, scoped, tag = 'scoped memory for tpu_custom_call.1']
    #allocation4 [shape = 's32[2]{0}', space=sflag, size = 0x8, scoped, tag = 'scoped memory for tpu_custom_call.1']
    #allocation5 [shape = 'u8[16384]{0}', space=vmem, size = 0x4000, scoped, tag = 'input window, operand 1']
    #allocation6 [shape = 's32[2]{0}', space=sflag, size = 0x8, scoped, tag = 'scoped memory for tpu_custom_call.1']
    #allocation7 [shape = 'u8[16384]{0}', space=vmem, size = 0x4000, scoped, tag = 'input window, operand 2']
    #allocation8 [shape = 'u8[8192]{0}', space=vmem, size = 0x2000, scoped, tag = 'output window, operand 0']
    %8 = vsyncpa [#allocation3], 0
    %s9 = scalar_lea.sflag [#allocation3], 1
    %10 = vsyncpa %s9, 0
    %11 = vsyncpa [#allocation6], 0
    %s12 = scalar_lea.sflag [#allocation6], 1
    %13 = vsyncpa %s12, 0
    %14 = vsyncpa [#allocation4], 0
    %s15 = scalar_lea.sflag [#allocation4], 1
    %16 = vsyncpa %s15, 0
    loop: start=0, step=1, limit=4
    $region2: #{tpu_custom_call.1} parent=1 // loop_pre_header
      _
    $region3: #{tpu_custom_call.1} parent=1 // loop_header
      %s18 = sphi 0, %s22
      %p19 = scmp.ge.s32.totalorder %s18, 4
      %s28 = sphi 0, %s30
      %s31 = sphi 0, %s28
      %s32 = sphi 0, %s31
      %s48 = sphi 0, %s32
      %s54 = sphi 0, %s56
      %s57 = sphi 0, %s54
      %s58 = sphi 0, %s57
      %s74 = sphi 0, %s58
      %s80 = sphi 0, %s82
      %s83 = sphi 0, %s80
      %s84 = sphi 0, %s83
      %s100 = sphi 0, %s84
      %s106 = sphi 0, %s108
      %s109 = sphi 0, %s106
      %s110 = sphi 0, %s109
      %s126 = sphi 0, %s110
    $region4: #{tpu_custom_call.1} parent=1 // loop_header_branch
      %21 = sbr.rel (%p19) target = $region8
    $region5: #{tpu_custom_call.1} parent=1 // loop_body
      %s23 = ssub.s32 %s18, 1
      %s24 = ssub.s32 %s18, 2
      %s25 = sadd.s32 %s18, 1
      %s26 = ssub.s32 %s18, %s25
      %p27 = scmp.eq.s32.totalorder %s26, 0
      %s29 = sadd.s32 %s28, 1
      %s30 = scalar_select %p27, %s28, %s29
      %p33 = pneg %p27
      %p34 = scmp.eq.s32.totalorder %s18, 1
      %p35 = por %p33, %p34
      %p36 = scmp.ne.s32.totalorder %s28, %s31
      %p37 = scmp.eq.s32.totalorder %s18, 0
      %p38 = por %p36, %p37
      %p39 = scmp.ne.s32.totalorder %s28, %s31
      %p40 = scmp.eq.s32.totalorder %s23, 1
      %p41 = por %p39, %p40
      %p42 = scmp.ne.s32.totalorder %s31, %s32
      %p43 = scmp.eq.s32.totalorder %s23, 0
      %p44 = por %p42, %p43
      %p45 = scmp.ne.s32.totalorder %s31, %s32
      %p46 = scmp.eq.s32.totalorder %s24, 1
      %p47 = por %p45, %p46
      %p49 = scmp.ne.s32.totalorder %s32, %s48
      %p50 = scmp.eq.s32.totalorder %s24, 0
      %p51 = por %p49, %p50
      %s52 = ssub.s32 %s18, %s25
      %p53 = scmp.eq.s32.totalorder %s52, 0
      %s55 = sadd.s32 %s54, 1
      %s56 = scalar_select %p53, %s54, %s55
      %p59 = pneg %p53
      %p60 = scmp.eq.s32.totalorder %s18, 1
      %p61 = por %p59, %p60
      %p62 = scmp.ne.s32.totalorder %s54, %s57
      %p63 = scmp.eq.s32.totalorder %s18, 0
      %p64 = por %p62, %p63
      %p65 = scmp.ne.s32.totalorder %s54, %s57
      %p66 = scmp.eq.s32.totalorder %s23, 1
      %p67 = por %p65, %p66
      %p68 = scmp.ne.s32.totalorder %s57, %s58
      %p69 = scmp.eq.s32.totalorder %s23, 0
      %p70 = por %p68, %p69
      %p71 = scmp.ne.s32.totalorder %s57, %s58
      %p72 = scmp.eq.s32.totalorder %s24, 1
      %p73 = por %p71, %p72
      %p75 = scmp.ne.s32.totalorder %s58, %s74
      %p76 = scmp.eq.s32.totalorder %s24, 0
      %p77 = por %p75, %p76
      %s78 = ssub.s32 %s18, %s25
      %p79 = scmp.eq.s32.totalorder %s78, 0
      %s81 = sadd.s32 %s80, 1
      %s82 = scalar_select %p79, %s80, %s81
      %p85 = pneg %p79
      %p86 = scmp.eq.s32.totalorder %s18, 1
      %p87 = por %p85, %p86
      %p88 = scmp.ne.s32.totalorder %s80, %s83
      %p89 = scmp.eq.s32.totalorder %s18, 0
      %p90 = por %p88, %p89
      %p91 = scmp.ne.s32.totalorder %s80, %s83
      %p92 = scmp.eq.s32.totalorder %s23, 1
      %p93 = por %p91, %p92
      %p94 = scmp.ne.s32.totalorder %s83, %s84
      %p95 = scmp.eq.s32.totalorder %s23, 0
      %p96 = por %p94, %p95
      %p97 = scmp.ne.s32.totalorder %s83, %s84
      %p98 = scmp.eq.s32.totalorder %s24, 1
      %p99 = por %p97, %p98
      %p101 = scmp.ne.s32.totalorder %s84, %s100
      %p102 = scmp.eq.s32.totalorder %s24, 0
      %p103 = por %p101, %p102
      %s104 = ssub.s32 %s18, %s25
      %p105 = scmp.eq.s32.totalorder %s104, 0
      %s107 = sadd.s32 %s106, 1
      %s108 = scalar_select %p105, %s106, %s107
      %p111 = pneg %p105
      %p112 = scmp.eq.s32.totalorder %s18, 1
      %p113 = por %p111, %p112
      %p114 = scmp.ne.s32.totalorder %s106, %s109
      %p115 = scmp.eq.s32.totalorder %s18, 0
      %p116 = por %p114, %p115
      %p117 = scmp.ne.s32.totalorder %s106, %s109
      %p118 = scmp.eq.s32.totalorder %s23, 1
      %p119 = por %p117, %p118
      %p120 = scmp.ne.s32.totalorder %s109, %s110
      %p121 = scmp.eq.s32.totalorder %s23, 0
      %p122 = por %p120, %p121
      %p123 = scmp.ne.s32.totalorder %s109, %s110
      %p124 = scmp.eq.s32.totalorder %s24, 1
      %p125 = por %p123, %p124
      %p127 = scmp.ne.s32.totalorder %s110, %s126
      %p128 = scmp.eq.s32.totalorder %s24, 0
      %p129 = por %p127, %p128
      %p130 = scmp.le.s32.totalorder 1, %s18
      %p131 = scmp.lt.s32.totalorder %s18, 3
      %p132 = pnand %p130, %p131
      %p133 = pneg %p132
      // Predicated region
      $region9: #{tpu_custom_call.1} parent=5 // pred_check
        _
      $region10: #{tpu_custom_call.1} parent=5 // pred_check_branch
        %135 = sbr.rel (%p132) target = $region12
      $region11: #{tpu_custom_call.1} parent=5 // pred_region
        %s136 = ssub.s32 %s18, 1
      $region12: #{tpu_custom_call.1} parent=5 // pred_fallthru
        _
      %p137 = scmp.lt.s32.totalorder %s18, 2
      // Predicated region
      $region13: #{tpu_custom_call.1} parent=5 // pred_check
        %p138 = pneg %p137
      $region14: #{tpu_custom_call.1} parent=5 // pred_check_branch
        %140 = sbr.rel (%p138) target = $region16
      $region15: #{tpu_custom_call.1} parent=5 // pred_region
        // Predicated region
        $region17: #{tpu_custom_call.1} parent=15 // pred_check
          %p141 = pneg %p38
        $region18: #{tpu_custom_call.1} parent=15 // pred_check_branch
          %143 = sbr.rel (%p141) target = $region20
        $region19: #{tpu_custom_call.1} parent=15 // pred_region
          %s144 = sand.u32 %s28, 1
          %s145 = scalar_lea.sflag [#allocation3], %s144
          %s146 = sand.u32 %s28, 1
          %s147 = smul.addr %s146, 8
          %s148 = scalar_lea.vmem [#allocation2], %s147
          %s150 = ssub.s32 128, 128
          %151 = vsyncadd %s145, %s150
          %s152 = smul.addr %s18, 128
          %s153 = scalar_lea.hbm %s0, %s152
          %s155 = sshll.u32 %s148, 4
          %s156 = int_to_ptr.vmem [resolvable:$true] %s155
          %158 = dma.hbm_to_vmem [thread:$0]  %s153, 128, %s156, %s145
        $region20: #{tpu_custom_call.1} parent=15 // pred_fallthru
          _
        // Predicated region
        $region21: #{tpu_custom_call.1} parent=15 // pred_check
          %p159 = pneg %p64
        $region22: #{tpu_custom_call.1} parent=15 // pred_check_branch
          %161 = sbr.rel (%p159) target = $region24
        $region23: #{tpu_custom_call.1} parent=15 // pred_region
          %s162 = sand.u32 %s18, 1
          %s163 = scalar_lea.sflag [#allocation6], %s162
          %s164 = sand.u32 %s54, 1
          %s165 = smul.addr %s164, 16
          %s166 = scalar_lea.vmem [#allocation5], %s165
          %s168 = ssub.s32 256, 256
          %169 = vsyncadd %s163, %s168
          %s170 = smul.addr %s18, 2
          %s171 = smul.addr %s170, 128
          %s172 = scalar_lea.hbm %s1, %s171
          %s174 = sshll.u32 %s166, 4
          %s175 = int_to_ptr.vmem [resolvable:$true] %s174
          %177 = dma.hbm_to_vmem [thread:$0]  %s172, 256, %s175, %s163
        $region24: #{tpu_custom_call.1} parent=15 // pred_fallthru
          _
        // Predicated region
        $region25: #{tpu_custom_call.1} parent=15 // pred_check
          %p178 = pneg %p90
        $region26: #{tpu_custom_call.1} parent=15 // pred_check_branch
          %180 = sbr.rel (%p178) target = $region28
        $region27: #{tpu_custom_call.1} parent=15 // pred_region
          %s181 = sand.u32 %s18, 1
          %s182 = scalar_lea.sflag [#allocation6], %s181
          %s183 = sand.u32 %s80, 1
          %s184 = smul.addr %s183, 16
          %s185 = scalar_lea.vmem [#allocation7], %s184
          %s187 = ssub.s32 256, 256
          %188 = vsyncadd %s182, %s187
          %s189 = smul.addr %s18, 2
          %s190 = smul.addr %s189, 128
          %s191 = scalar_lea.hbm %s2, %s190
          %s193 = sshll.u32 %s185, 4
          %s194 = int_to_ptr.vmem [resolvable:$true] %s193
          %196 = dma.hbm_to_vmem [thread:$0]  %s191, 256, %s194, %s182
        $region28: #{tpu_custom_call.1} parent=15 // pred_fallthru
          _
      $region16: #{tpu_custom_call.1} parent=5 // pred_fallthru
        _
      %p197 = scmp.le.s32.totalorder 1, %s18
      %p198 = scmp.lt.s32.totalorder %s18, 3
      %p199 = pnand %p197, %p198
      %p200 = pneg %p199
      // Predicated region
      $region29: #{tpu_custom_call.1} parent=5 // pred_check
        _
      $region30: #{tpu_custom_call.1} parent=5 // pred_check_branch
        %202 = sbr.rel (%p199) target = $region32
      $region31: #{tpu_custom_call.1} parent=5 // pred_region
        %s203 = ssub.s32 %s18, 1
        %s204 = sand.u32 %s31, 1
        %s205 = scalar_lea.sflag [#allocation3], %s204
        %s206 = sand.u32 %s31, 1
        %s207 = smul.addr %s206, 8
        %s208 = scalar_lea.vmem [#allocation2], %s207
        // Predicated region
        $region33: #{tpu_custom_call.1} parent=31 // pred_check
          %p209 = pneg %p44
        $region34: #{tpu_custom_call.1} parent=31 // pred_check_branch
          %211 = sbr.rel (%p209) target = $region36
        $region35: #{tpu_custom_call.1} parent=31 // pred_region
          %212 = dma.done %s205, 128
        $region36: #{tpu_custom_call.1} parent=31 // pred_fallthru
          _
        %s213 = sand.u32 %s23, 1
        %s214 = scalar_lea.sflag [#allocation6], %s213
        %s215 = sand.u32 %s57, 1
        %s216 = smul.addr %s215, 16
        %s217 = scalar_lea.vmem [#allocation5], %s216
        // Predicated region
        $region37: #{tpu_custom_call.1} parent=31 // pred_check
          %p218 = pneg %p70
        $region38: #{tpu_custom_call.1} parent=31 // pred_check_branch
          %220 = sbr.rel (%p218) target = $region40
        $region39: #{tpu_custom_call.1} parent=31 // pred_region
          %221 = dma.done %s214, 256
        $region40: #{tpu_custom_call.1} parent=31 // pred_fallthru
          _
        %s222 = sand.u32 %s23, 1
        %s223 = scalar_lea.sflag [#allocation6], %s222
        %s224 = sand.u32 %s83, 1
        %s225 = smul.addr %s224, 16
        %s226 = scalar_lea.vmem [#allocation7], %s225
        // Predicated region
        $region41: #{tpu_custom_call.1} parent=31 // pred_check
          %p227 = pneg %p96
        $region42: #{tpu_custom_call.1} parent=31 // pred_check_branch
          %229 = sbr.rel (%p227) target = $region44
        $region43: #{tpu_custom_call.1} parent=31 // pred_region
          %230 = dma.done %s223, 256
        $region44: #{tpu_custom_call.1} parent=31 // pred_fallthru
          _
        %s231 = sand.u32 %s31, 1
        %s232 = scalar_lea.sflag [#allocation3], %s231
        %s233 = sand.u32 %s31, 1
        %s234 = smul.addr %s233, 8
        %s235 = scalar_lea.vmem [#allocation2], %s234
        %p236 = pneg %p44
        %p237 = pneg %p41
        %s238 = sand.u32 %s23, 1
        %s239 = scalar_lea.sflag [#allocation6], %s238
        %s240 = sand.u32 %s57, 1
        %s241 = smul.addr %s240, 16
        %s242 = scalar_lea.vmem [#allocation5], %s241
        %p243 = pneg %p70
        %p244 = pneg %p67
        %s245 = sand.u32 %s23, 1
        %s246 = scalar_lea.sflag [#allocation6], %s245
        %s247 = sand.u32 %s83, 1
        %s248 = smul.addr %s247, 16
        %s249 = scalar_lea.vmem [#allocation7], %s248
        %p250 = pneg %p96
        %p251 = pneg %p93
        %p252 = pneg %p122
        %p253 = pneg %p119
        %s254 = sand.u32 %s109, 1
        %s255 = scalar_lea.sflag [#allocation4], %s254
        %s256 = sand.u32 %s109, 1
        %s257 = smul.addr %s256, 8
        %s258 = scalar_lea.vmem [#allocation8], %s257
        %v259 = vld [vmem:[%s208] sm:$0xff]
        %v260 = vld [vmem:[%s217] sm:$0xff]
        %v261 = vld [vmem:[%s226] sm:$0xff]
        %v262 = vmul.f32 %v259, %v260
        %263 = vadd.xlane.f32.xlu0 %v262
        %v264 = vpop.xlane.xlu0 %263
        %v265 = vmul.f32 %v264, %v261
        %v266 = vadd.f32 %v265, 0.0
        %v267 = vld [vmem:[%s217 + $0x8] sm:$0xff]
        %v268 = vld [vmem:[%s226 + $0x8] sm:$0xff]
        %v269 = vmul.f32 %v259, %v267
        %270 = vadd.xlane.f32.xlu0 %v269
        %v271 = vpop.xlane.xlu0 %270
        %v272 = vmul.f32 %v271, %v268
        %v273 = vadd.f32 %v266, %v272
        %274 = vst [vmem:[%s258] sm:$0xff] %v273
        %s275 = sand.u32 %s109, 1
        %s276 = scalar_lea.sflag [#allocation4], %s275
        %s277 = sand.u32 %s109, 1
        %s278 = smul.addr %s277, 8
        %s279 = scalar_lea.vmem [#allocation8], %s278
        // Predicated region
        $region45: #{tpu_custom_call.1} parent=31 // pred_check
          %p280 = pneg %p119
        $region46: #{tpu_custom_call.1} parent=31 // pred_check_branch
          %282 = sbr.rel (%p280) target = $region48
        $region47: #{tpu_custom_call.1} parent=31 // pred_region
          %s284 = ssub.s32 128, 128
          %285 = vsyncadd %s276, %s284
          %s286 = smul.addr %s23, 128
          %s287 = scalar_lea.hbm %s3, %s286
          %s289 = sshll.u32 %s279, 4
          %s290 = int_to_ptr.vmem [resolvable:$true] %s289
          %292 = dma.vmem_to_hbm [thread:$0]  %s290, 128, %s287, %s276
        $region48: #{tpu_custom_call.1} parent=31 // pred_fallthru
          _
      $region32: #{tpu_custom_call.1} parent=5 // pred_fallthru
        _
      %p293 = scmp.le.s32.totalorder 2, %s18
      // Predicated region
      $region49: #{tpu_custom_call.1} parent=5 // pred_check
        %p294 = pneg %p293
      $region50: #{tpu_custom_call.1} parent=5 // pred_check_branch
        %296 = sbr.rel (%p294) target = $region52
      $region51: #{tpu_custom_call.1} parent=5 // pred_region
        %s297 = ssub.s32 %s18, 2
        // Predicated region
        $region53: #{tpu_custom_call.1} parent=51 // pred_check
          %p298 = pneg %p125
        $region54: #{tpu_custom_call.1} parent=51 // pred_check_branch
          %300 = sbr.rel (%p298) target = $region56
        $region55: #{tpu_custom_call.1} parent=51 // pred_region
          %s301 = sand.u32 %s110, 1
          %s302 = scalar_lea.sflag [#allocation4], %s301
          %s303 = sand.u32 %s110, 1
          %s304 = smul.addr %s303, 8
          %s305 = scalar_lea.vmem [#allocation8], %s304
          %306 = dma.done %s302, 128
        $region56: #{tpu_custom_call.1} parent=51 // pred_fallthru
          _
      $region52: #{tpu_custom_call.1} parent=5 // pred_fallthru
        _
    $region6: #{tpu_custom_call.1} parent=1 // loop_footer
      %s22 = sadd.s32 1, %s18
    $region7: #{tpu_custom_call.1} parent=1 // loop_footer_branch
      %17 = sbr.rel target = $region3
    $region8: #{tpu_custom_call.1} parent=1 // loop_exit
      _
    %307 = vsyncpa [#allocation3], 1
    %s308 = scalar_lea.sflag [#allocation3], 1
    %309 = vsyncpa %s308, 1
    %310 = vsyncpa [#allocation6], 1
    %s311 = scalar_lea.sflag [#allocation6], 1
    %312 = vsyncpa %s311, 1
    %313 = vsyncpa [#allocation4], 1
    %s314 = scalar_lea.sflag [#allocation4], 1
    %315 = vsyncpa %s314, 1

</llo_original>
